<compile_context>
chip_gen: v7x
topology: tpu7x:2x2x1
jax: 0.10.0
libtpu: 0.0.40
codegen_flags: <defaults>
</compile_context>

<pallas_src>
import functools
import numpy as np

import jax
import jax.numpy as jnp
from jax.experimental import pallas as pl
from jax.experimental.pallas import tpu as pltpu


# ----------------------------------------------------------------------------- helpers
def _round_up(x, m):
    return ((x + m - 1) // m) * m


class _KeyGen:
    def __init__(self, seed):
        self._key = jax.random.PRNGKey(seed)

    def next(self):
        self._key, sub = jax.random.split(self._key)
        return sub


# ----------------------------------------------------------------------------- Pallas kernels
def _make_mm_bn_kernel(do_relu: bool, has_res: bool):
    """Fused (im2col-patches @ weight) * scale + bias [+ residual] [-> relu].

    Accumulates in an f32 VMEM scratch across the K grid axis; bf16 output tile is
    written once (on the last K step) with the epilogue applied.
    """

    def kernel(*refs):
        if has_res:
            a_ref, b_ref, s_ref, c_ref, r_ref, o_ref, acc_ref = refs
        else:
            a_ref, b_ref, s_ref, c_ref, o_ref, acc_ref = refs
            r_ref = None

        k = pl.program_id(2)
        nk = pl.num_programs(2)

        @pl.when(k == 0)
        def _():
            acc_ref[...] = jnp.zeros_like(acc_ref)

        acc = acc_ref[...] + jnp.dot(a_ref[...], b_ref[...],
                                     preferred_element_type=jnp.float32)

        @pl.when(k < nk - 1)
        def _():
            acc_ref[...] = acc

        @pl.when(k == nk - 1)
        def _():
            y = acc * s_ref[...] + c_ref[...]
            if r_ref is not None:
                y = y + r_ref[...].astype(jnp.float32)
            if do_relu:
                y = jnp.maximum(y, 0.0)
            o_ref[...] = y.astype(o_ref.dtype)

    return kernel


def _maxpool_kernel(x_ref, o_ref):
    # x_ref: (KH*KW, tm, C) window-stacked patches; max-reduce over the window axis.
    o_ref[...] = jnp.max(x_ref[...], axis=0).astype(o_ref.dtype)


def _head_kernel(x_ref, w_ref, b_ref, o_ref):
    # x_ref: (HW, NbP, C) bf16. Global average pool -> fc -> softmax(dim=1).
    # Padded classes carry a huge-negative bias so their softmax weight is exactly 0.
    pooled = jnp.mean(x_ref[...].astype(jnp.float32), axis=0)          # (NbP, C)
    logits = jnp.dot(pooled.astype(jnp.bfloat16), w_ref[...],
                     preferred_element_type=jnp.float32) + b_ref[...]
    m = jnp.max(logits, axis=-1, keepdims=True)
    e = jnp.exp(logits - m)
    o_ref[...] = (e / jnp.sum(e, axis=-1, keepdims=True)).astype(o_ref.dtype)


# ----------------------------------------------------------------------------- Pallas wrappers
def _pick_k_tile(K):
    """Largest of (512, 256, 128) that adds no padding beyond 128-alignment."""
    kp = _round_up(K, 128)
    for t in (512, 256):
        if _round_up(K, t) == kp:
            return t, kp
    return 128, kp


def _fused_matmul_bn(a, b, scale, bias, residual, relu):
    """a: (M, K) patches, b: (K, N) weight (bf16), scale/bias: (N,). Returns (M, N) bf16."""
    M, K = a.shape
    _, N = b.shape

    Np = _round_up(N, 128)
    tk, Kp = _pick_k_tile(K)

    # M tile: prefer big tiles but keep >=2 M-blocks for megacore when M is moderate.
    if M >= 1024:
        tm = 512
    elif M > 256:
        tm = 256
    else:
        tm = _round_up(M, 16)          # bf16 sublane packing
    Mp = _round_up(M, tm)
    grid_m = Mp // tm

    if Np % 512 == 0:
        tn = 512
    elif Np % 256 == 0:
        tn = 256
    else:
        tn = 128
    # v7x megacore: keep at least one "parallel" grid axis with extent >= 2 when possible.
    if grid_m == 1 and Np // tn == 1 and tn >= 256:
        tn //= 2
    grid_n = Np // tn
    grid_k = Kp // tk

    a = a.astype(jnp.bfloat16)
    b = b.astype(jnp.bfloat16)
    if (Mp, Kp) != (M, K):
        a = jnp.pad(a, ((0, Mp - M), (0, Kp - K)))
    if (Kp, Np) != (K, N):
        b = jnp.pad(b, ((0, Kp - K), (0, Np - N)))
    if Np != N:
        scale = jnp.pad(scale, (0, Np - N))
        bias = jnp.pad(bias, (0, Np - N))
    scale2 = scale.reshape(1, Np).astype(jnp.float32)
    bias2 = bias.reshape(1, Np).astype(jnp.float32)

    in_specs = [
        pl.BlockSpec((tm, tk), lambda i, j, k: (i, k)),
        pl.BlockSpec((tk, tn), lambda i, j, k: (k, j)),
        pl.BlockSpec((1, tn), lambda i, j, k: (0, j)),
        pl.BlockSpec((1, tn), lambda i, j, k: (0, j)),
    ]
    args = [a, b, scale2, bias2]
    has_res = residual is not None
    if has_res:
        r = residual.astype(jnp.bfloat16)
        if (Mp, Np) != (M, N):
            r = jnp.pad(r, ((0, Mp - M), (0, Np - N)))
        in_specs.append(pl.BlockSpec((tm, tn), lambda i, j, k: (i, j)))
        args.append(r)

    flops = 2 * Mp * Np * Kp
    # Account for actual grid re-reads: A is read once per N-block, B once per M-block.
    bytes_accessed = (Mp * Kp * 2) * grid_n + (Kp * Np * 2) * grid_m + Mp * Np * 2
    if has_res:
        bytes_accessed += Mp * Np * 2

    out = pl.pallas_call(
        _make_mm_bn_kernel(relu, has_res),
        out_shape=jax.ShapeDtypeStruct((Mp, Np), jnp.bfloat16),
        grid_spec=pltpu.PrefetchScalarGridSpec(
            num_scalar_prefetch=0,
            grid=(grid_m, grid_n, grid_k),
            in_specs=in_specs,
            out_specs=pl.BlockSpec((tm, tn), lambda i, j, k: (i, j)),
            scratch_shapes=[pltpu.VMEM((tm, tn), jnp.float32)],
        ),
        compiler_params=pltpu.CompilerParams(
            dimension_semantics=("parallel", "parallel", "arbitrary"),
        ),
        cost_estimate=pl.CostEstimate(flops=int(flops), transcendentals=0,
                                      bytes_accessed=int(bytes_accessed)),
    )(*args)

    if (Mp, Np) != (M, N):
        out = out[:M, :N]
    return out


@functools.partial(jax.jit, static_argnames=("kh", "kw", "stride", "pad", "relu"))
def _conv_bn_apply(x, wmat, scale, bias, residual, kh, kw, stride, pad, relu):
    """x: NHWC. wmat: (kh*kw*Cin, Cout) bf16 (HWIO flattened). Returns NHWC bf16."""
    Nb, H, W, Cin = x.shape
    K, Cout = wmat.shape
    Ho = (H + 2 * pad - kh) // stride + 1
    Wo = (W + 2 * pad - kw) // stride + 1

    x = x.astype(jnp.bfloat16)     # bf16 im2col: halves the patch materialization bytes
    xp = jnp.pad(x, ((0, 0), (pad, pad), (pad, pad), (0, 0))) if pad > 0 else x

    if kh == 1 and kw == 1 and stride == 1:
        patches = xp
    else:
        # TODO(synk): fuse this im2col into the matmul kernel (halo-window DMA from pl.ANY).
        cols = []
        for ky in range(kh):
            for kx in range(kw):
                cols.append(xp[:, ky:ky + (Ho - 1) * stride + 1:stride,
                               kx:kx + (Wo - 1) * stride + 1:stride, :])
        patches = jnp.concatenate(cols, axis=-1)

    a = patches.reshape(Nb * Ho * Wo, K)
    res2d = None if residual is None else residual.reshape(Nb * Ho * Wo, Cout)
    out2d = _fused_matmul_bn(a, wmat, scale, bias, res2d, relu)
    return out2d.reshape(Nb, Ho, Wo, Cout)


def conv_bn(x, p, stride, pad, relu, residual=None):
    k = p["k"]
    return _conv_bn_apply(x, p["wmat"], p["scale"], p["bias"], residual,
                          kh=k, kw=k, stride=stride, pad=pad, relu=relu)


@jax.jit
def maxpool_3x3_s2_p1(x):
    Nb, H, W, C = x.shape
    Ho = (H + 2 - 3) // 2 + 1
    Wo = (W + 2 - 3) // 2 + 1
    x = x.astype(jnp.bfloat16)
    xp = jnp.pad(x, ((0, 0), (1, 1), (1, 1), (0, 0)),
                 constant_values=-jnp.inf)
    cols = []
    for ky in range(3):
        for kx in range(3):
            cols.append(xp[:, ky:ky + (Ho - 1) * 2 + 1:2,
                           kx:kx + (Wo - 1) * 2 + 1:2, :])
    M = Nb * Ho * Wo
    stacked = jnp.stack(cols, axis=0).reshape(9, M, C)

    tm = 512 if M > 512 else _round_up(M, 16)
    Mp = _round_up(M, tm)
    if Mp != M:
        stacked = jnp.pad(stacked, ((0, 0), (0, Mp - M), (0, 0)))

    # No channel padding: block last dim == full array dim (legal), keeps traffic minimal.
    out = pl.pallas_call(
        _maxpool_kernel,
        out_shape=jax.ShapeDtypeStruct((Mp, C), jnp.bfloat16),
        grid_spec=pltpu.PrefetchScalarGridSpec(
            num_scalar_prefetch=0,
            grid=(Mp // tm,),
            in_specs=[pl.BlockSpec((9, tm, C), lambda i: (0, i, 0))],
            out_specs=pl.BlockSpec((tm, C), lambda i: (i, 0)),
        ),
        compiler_params=pltpu.CompilerParams(dimension_semantics=("parallel",)),
    )(stacked)
    return out[:M].reshape(Nb, Ho, Wo, C)


@jax.jit
def head_apply(x_nhwc, fc_w, fc_b):
    Nb, H, W, C = x_nhwc.shape
    Ncls = fc_w.shape[1]
    NbP = _round_up(Nb, 8)
    Np = _round_up(Ncls, 128)                                     # lane-dense classes

    feats = jnp.transpose(x_nhwc.reshape(Nb, H * W, C), (1, 0, 2)).astype(jnp.bfloat16)
    if NbP != Nb:
        feats = jnp.pad(feats, ((0, 0), (0, NbP - Nb), (0, 0)))
    w = fc_w.astype(jnp.bfloat16)
    if Np != Ncls:
        w = jnp.pad(w, ((0, 0), (0, Np - Ncls)))
    # padded classes get a huge negative bias -> exp() underflows to exactly 0.
    b = jnp.pad(fc_b, (0, Np - Ncls), constant_values=-1e30) if Np != Ncls else fc_b
    b2 = b.reshape(1, Np).astype(jnp.float32)

    out = pl.pallas_call(
        _head_kernel,
        out_shape=jax.ShapeDtypeStruct((NbP, Np), jnp.float32),
        grid_spec=pltpu.PrefetchScalarGridSpec(
            num_scalar_prefetch=0,
            grid=(1,),
            in_specs=[pl.BlockSpec((H * W, NbP, C), lambda i: (0, 0, 0)),
                      pl.BlockSpec((C, Np), lambda i: (0, 0)),
                      pl.BlockSpec((1, Np), lambda i: (0, 0))],
            out_specs=pl.BlockSpec((NbP, Np), lambda i: (0, 0)),
        ),
    )(feats, w, b2)
    return out[:Nb, :Ncls]


# ----------------------------------------------------------------------------- parameters
def _conv_bn_params(kg, cin, cout, k):
    w = jax.random.normal(kg.next(), (cout, cin, k, k), jnp.float32) \
        * (1.0 / np.sqrt(cin * k * k))
    gamma = 1.0 + 0.1 * jax.random.normal(kg.next(), (cout,), jnp.float32)
    beta = 0.1 * jax.random.normal(kg.next(), (cout,), jnp.float32)
    rmean = 0.1 * jax.random.normal(kg.next(), (cout,), jnp.float32)
    rvar = jnp.abs(1.0 + 0.1 * jax.random.normal(kg.next(), (cout,), jnp.float32))
    eps = 1e-5
    scale = gamma / jnp.sqrt(rvar + eps)
    bias = beta - rmean * scale
    # (Cout, Cin, kh, kw) -> (kh, kw, Cin, Cout) -> (kh*kw*Cin, Cout); pre-cast to bf16
    # once so forward passes never re-cast the full weight set.
    wmat = jnp.transpose(w, (2, 3, 1, 0)).reshape(k * k * cin, cout).astype(jnp.bfloat16)
    return {"wmat": wmat, "scale": scale, "bias": bias, "k": k}


def make_resnet50_params(seed=42, num_classes=10):
    kg = _KeyGen(seed)
    params = {"conv1": _conv_bn_params(kg, 3, 64, 7)}
    in_ch = 64
    layers = []
    for width, nblocks, stride in [(64, 3, 1), (128, 4, 2), (256, 6, 2), (512, 3, 2)]:
        out_ch = width * 4
        blocks = []
        for bi in range(nblocks):
            s = stride if bi == 0 else 1
            blk = {
                "c1": _conv_bn_params(kg, in_ch, width, 1),
                "c2": _conv_bn_params(kg, width, width, 3),
                "c3": _conv_bn_params(kg, width, out_ch, 1),
                "stride": s,
            }
            if bi == 0:
                blk["down"] = _conv_bn_params(kg, in_ch, out_ch, 1)
            blocks.append(blk)
            in_ch = out_ch
        layers.append(blocks)
    params["layers"] = layers
    fc_w = jax.random.normal(kg.next(), (num_classes, 2048), jnp.float32) \
        * (1.0 / np.sqrt(2048))
    params["fc_w"] = jnp.transpose(fc_w)          # (2048, num_classes)
    params["fc_b"] = jnp.zeros((num_classes,), jnp.float32)
    return params


# ----------------------------------------------------------------------------- forward pass
def _bottleneck(x, blk):
    s = blk["stride"]
    out = conv_bn(x, blk["c1"], stride=1, pad=0, relu=True)
    out = conv_bn(out, blk["c2"], stride=s, pad=1, relu=True)
    if "down" in blk:
        idn = conv_bn(x, blk["down"], stride=s, pad=0, relu=False)
    else:
        idn = x
    # conv3 + BN + residual-add + ReLU (all fused in the Pallas matmul kernel)
    out = conv_bn(out, blk["c3"], stride=1, pad=0, relu=True, residual=idn)
    return out


def resnet50_forward(x_nchw, params):
    x = jnp.transpose(x_nchw, (0, 2, 3, 1)).astype(jnp.float32)   # NCHW -> NHWC
    x = conv_bn(x, params["conv1"], stride=2, pad=3, relu=True)
    x = maxpool_3x3_s2_p1(x)
    for blocks in params["layers"]:
        for blk in blocks:
            x = _bottleneck(x, blk)
    return head_apply(x, params["fc_w"], params["fc_b"])          # (N, 10) softmax


# ----------------------------------------------------------------------------- pure-JAX reference
def reference_forward(x_nchw, params):
    # Mirrors the Pallas numerics: bf16 conv operands, f32 accumulation + epilogue,
    # bf16 activation storage between layers, bf16 fc operands.
    def conv_bn_ref(x, p, stride, pad, relu, residual=None):
        k = p["k"]
        K, cout = p["wmat"].shape
        cin = K // (k * k)
        w = p["wmat"].reshape(k, k, cin, cout)                    # bf16 HWIO
        y = jax.lax.conv_general_dilated(
            x.astype(jnp.bfloat16), w, window_strides=(stride, stride),
            padding=((pad, pad), (pad, pad)),
            dimension_numbers=("NHWC", "HWIO", "NHWC"),
            preferred_element_type=jnp.float32)
        y = y * p["scale"] + p["bias"]
        if residual is not None:
            y = y + residual.astype(jnp.float32)
        if relu:
            y = jnp.maximum(y, 0.0)
        return y.astype(jnp.bfloat16)

    x = jnp.transpose(x_nchw, (0, 2, 3, 1)).astype(jnp.float32)
    x = conv_bn_ref(x, params["conv1"], 2, 3, True)
    x = jax.lax.reduce_window(x, jnp.asarray(-jnp.inf, x.dtype), jax.lax.max,
                              (1, 3, 3, 1), (1, 2, 2, 1),
                              [(0, 0), (1, 1), (1, 1), (0, 0)])
    for blocks in params["layers"]:
        for blk in blocks:
            s = blk["stride"]
            out = conv_bn_ref(x, blk["c1"], 1, 0, True)
            out = conv_bn_ref(out, blk["c2"], s, 1, True)
            idn = conv_bn_ref(x, blk["down"], s, 0, False) if "down" in blk else x
            x = conv_bn_ref(out, blk["c3"], 1, 0, True, residual=idn)
    pooled = jnp.mean(x.astype(jnp.float32), axis=(1, 2))
    logits = jnp.dot(pooled.astype(jnp.bfloat16),
                     params["fc_w"].astype(jnp.bfloat16),
                     preferred_element_type=jnp.float32) + params["fc_b"]
    return jax.nn.softmax(logits, axis=1)


# ----------------------------------------------------------------------------- main
if __name__ == "__main__":
    key = jax.random.PRNGKey(0)
    x = jax.random.normal(key, (2, 3, 32, 32), jnp.float32)   # small NCHW input
    params = make_resnet50_params(seed=42, num_classes=10)

    out = resnet50_forward(x, params)
    out = jax.block_until_ready(out)

    assert out.shape == (2, 10), f"unexpected output shape {out.shape}"
    assert bool(jnp.all(jnp.isfinite(out))), "non-finite output"
    assert bool(jnp.allclose(jnp.sum(out, axis=1), 1.0, atol=1e-4)), "softmax rows must sum to 1"

    ref = jax.block_until_ready(reference_forward(x, params))
    max_err = float(jnp.max(jnp.abs(out - ref)))
    assert max_err < 3e-3, f"mismatch vs pure-JAX reference: {max_err}"

    print("KERNEL_OK")
</pallas_src>

<mosaic_0001>
module attributes {stable_mosaic.version = 11 : i64} {
  func.func @kernel(%arg0: i32, %arg1: i32, %arg2: i32, %arg3: memref<256x256xbf16, #tpu.memory_space<vmem>>, %arg4: memref<256x128xbf16, #tpu.memory_space<vmem>>, %arg5: memref<1x128xf32, #tpu.memory_space<vmem>>, %arg6: memref<1x128xf32, #tpu.memory_space<vmem>>, %arg7: memref<256x128xbf16, #tpu.memory_space<vmem>>, %arg8: memref<256x128xf32, #tpu.memory_space<vmem>>) attributes {dimension_semantics = [#tpu.dimension_semantics<parallel>, #tpu.dimension_semantics<parallel>, #tpu.dimension_semantics<arbitrary>], iteration_bounds = array<i64: 2, 1, 1>, scalar_prefetch = 0 : i64, scratch_operands = 1 : i64, tpu.core_type = #tpu.core_type<tc>, window_params = [{transform_indices = @transform_0, window_bounds = array<i64: 256, 256>}, {transform_indices = @transform_1, window_bounds = array<i64: 256, 128>}, {transform_indices = @transform_2, window_bounds = array<i64: 1, 128>}, {transform_indices = @transform_3, window_bounds = array<i64: 1, 128>}, {transform_indices = @transform_4, window_bounds = array<i64: 256, 128>}]} {
    %c0_i32 = arith.constant 0 : i32
    %0 = arith.cmpi eq, %arg2, %c0_i32 : i32
    %1 = arith.extui %0 : i1 to i32
    %c0_i32_0 = arith.constant 0 : i32
    %2 = arith.cmpi ne, %1, %c0_i32_0 : i32
    scf.if %2 {
      %cst_10 = arith.constant 0.000000e+00 : f32
      %14 = vector.broadcast %cst_10 : f32 to vector<256x128xf32>
      %c0_11 = arith.constant 0 : index
      %c0_12 = arith.constant 0 : index
      %15 = vector.load %arg8[%c0_11, %c0_12] : memref<256x128xf32, #tpu.memory_space<vmem>>, vector<256x128xf32>
      tpu.vector_store %arg8[%c0_11, %c0_12], %14 {strides = array<i32>} : memref<256x128xf32, #tpu.memory_space<vmem>>, vector<256x128xf32>,
    } else {
    }
    %c0 = arith.constant 0 : index
    %c0_1 = arith.constant 0 : index
    %3 = vector.load %arg8[%c0, %c0_1] : memref<256x128xf32, #tpu.memory_space<vmem>>, vector<256x128xf32>
    %c0_2 = arith.constant 0 : index
    %c0_3 = arith.constant 0 : index
    %4 = vector.load %arg3[%c0_2, %c0_3] : memref<256x256xbf16, #tpu.memory_space<vmem>>, vector<256x256xbf16>
    %c0_4 = arith.constant 0 : index
    %c0_5 = arith.constant 0 : index
    %5 = vector.load %arg4[%c0_4, %c0_5] : memref<256x128xbf16, #tpu.memory_space<vmem>>, vector<256x128xbf16>
    %cst = arith.constant dense<0.000000e+00> : vector<256x128xf32>
    %6 = tpu.matmul %4, %5, %cst {dimension_numbers = #tpu.dot_dimension_numbers<[1], [0], [0], [1], [0, 0, 1, 1], [], []>} : vector<256x256xbf16>, vector<256x128xbf16>, vector<256x128xf32> -> vector<256x128xf32>
    %7 = arith.addf %3, %6 : vector<256x128xf32>
    %c0_i32_6 = arith.constant 0 : i32
    %8 = arith.cmpi slt, %arg2, %c0_i32_6 : i32
    %9 = arith.extui %8 : i1 to i32
    %c0_i32_7 = arith.constant 0 : i32
    %10 = arith.cmpi ne, %9, %c0_i32_7 : i32
    scf.if %10 {
      %c0_10 = arith.constant 0 : index
      %c0_11 = arith.constant 0 : index
      %14 = vector.load %arg8[%c0_10, %c0_11] : memref<256x128xf32, #tpu.memory_space<vmem>>, vector<256x128xf32>
      tpu.vector_store %arg8[%c0_10, %c0_11], %7 {strides = array<i32>} : memref<256x128xf32, #tpu.memory_space<vmem>>, vector<256x128xf32>,
    } else {
    }
    %c0_i32_8 = arith.constant 0 : i32
    %11 = arith.cmpi eq, %arg2, %c0_i32_8 : i32
    %12 = arith.extui %11 : i1 to i32
    %c0_i32_9 = arith.constant 0 : i32
    %13 = arith.cmpi ne, %12, %c0_i32_9 : i32
    scf.if %13 {
      %c0_10 = arith.constant 0 : index
      %c0_11 = arith.constant 0 : index
      %14 = vector.load %arg5[%c0_10, %c0_11] : memref<1x128xf32, #tpu.memory_space<vmem>>, vector<1x128xf32>
      %15 = vector.broadcast %14 : vector<1x128xf32> to vector<256x128xf32>
      %16 = arith.mulf %7, %15 : vector<256x128xf32>
      %c0_12 = arith.constant 0 : index
      %c0_13 = arith.constant 0 : index
      %17 = vector.load %arg6[%c0_12, %c0_13] : memref<1x128xf32, #tpu.memory_space<vmem>>, vector<1x128xf32>
      %18 = vector.broadcast %17 : vector<1x128xf32> to vector<256x128xf32>
      %19 = arith.addf %16, %18 : vector<256x128xf32>
      %cst_14 = arith.constant 0.000000e+00 : f32
      %20 = vector.broadcast %cst_14 : f32 to vector<256x128xf32>
      %21 = arith.maximumf %19, %20 : vector<256x128xf32>
      %22 = arith.truncf %21 : vector<256x128xf32> to vector<256x128xbf16>
      %c0_15 = arith.constant 0 : index
      %c0_16 = arith.constant 0 : index
      %23 = vector.load %arg7[%c0_15, %c0_16] : memref<256x128xbf16, #tpu.memory_space<vmem>>, vector<256x128xbf16>
      tpu.vector_store %arg7[%c0_15, %c0_16], %22 {strides = array<i32>} : memref<256x128xbf16, #tpu.memory_space<vmem>>, vector<256x128xbf16>,
    } else {
    }
    return
  }
  func.func @transform_0(%arg0: i32, %arg1: i32, %arg2: i32) -> (i32, i32) {
    %c0_i32 = arith.constant 0 : i32
    return %arg0, %arg2 : i32, i32
  }
  func.func @transform_1(%arg0: i32, %arg1: i32, %arg2: i32) -> (i32, i32) {
    %c0_i32 = arith.constant 0 : i32
    return %arg2, %arg1 : i32, i32
  }
  func.func @transform_2(%arg0: i32, %arg1: i32, %arg2: i32) -> (i32, i32) {
    %c0_i32 = arith.constant 0 : i32
    %c0_i32_0 = arith.constant 0 : i32
    return %c0_i32, %arg1 : i32, i32
  }
  func.func @transform_3(%arg0: i32, %arg1: i32, %arg2: i32) -> (i32, i32) {
    %c0_i32 = arith.constant 0 : i32
    %c0_i32_0 = arith.constant 0 : i32
    return %c0_i32, %arg1 : i32, i32
  }
  func.func @transform_4(%arg0: i32, %arg1: i32, %arg2: i32) -> (i32, i32) {
    %c0_i32 = arith.constant 0 : i32
    return %arg0, %arg1 : i32, i32
  }
}

</mosaic_0001>

<llo_original>
// kernel: _conv_bn_apply.1
$region0: #{_conv_bn_apply.1}
  #allocation0 [shape = 'u32[]', space=smem, size = 0x4, offset = 0x4, fixed_abs, tag = 'smem constant byte address 0x4 - core index']
  #allocation1 [shape = 'u32[144,128]{1,0:T(1,128)}', space=vmem, size = 0x12000, scoped, tag = 'internal scratch']
  #allocation2 [shape = 'f32[256,128]{1,0:T(8,128)}', space=vmem, size = 0x20000, scoped, tag = 'scratch operand']
  %s0 = inlined_call_operand.vmem [shape: bf16[512,256], index: 0, kind: input, shape index: {}]
  %s1 = inlined_call_operand.vmem [shape: bf16[256,128], index: 1, kind: input, shape index: {}]
  %s2 = inlined_call_operand.vmem [shape: f32[1,128], index: 2, kind: input, shape index: {}]
  %s3 = inlined_call_operand.vmem [shape: f32[1,128], index: 3, kind: input, shape index: {}]
  %s4 = inlined_call_operand.hbm [shape: bf16[512,128], index: 4, kind: output, shape index: {}]
  %s5 = sld [smem:[#allocation0]]
  $region61: #{_conv_bn_apply.1} parent=0
    _
  %s7 = ssub.s32 1, %s5
  %s8 = scalar_select 0, %s7, %s5
  $region1: #{_conv_bn_apply.1} parent=0
    #allocation3 [shape = 'u8[131072]{0}', space=vmem, size = 0x20000, scoped, tag = 'output window, operand 0']
    #allocation4 [shape = 's32[2]{0}', space=sflag, size = 0x8, scoped, tag = 'scoped memory for _conv_bn_apply.1']
    %9 = vsyncpa [#allocation4], 0
    %s10 = scalar_lea.sflag [#allocation4], 1
    %11 = vsyncpa %s10, 0
    loop: start=0, step=1, limit=4
    $region2: #{_conv_bn_apply.1} parent=1 // loop_pre_header
      _
    $region3: #{_conv_bn_apply.1} parent=1 // loop_header
      %s13 = sphi 0, %s17
      %p14 = scmp.ge.s32.totalorder %s13, 4
      %s20 = sphi 0, %s39
      %s21 = sphi 0, %s35
      %s22 = sphi 0, %s31
      %s23 = sphi 0, %s20
      %s24 = sphi 0, %s21
      %s25 = sphi 0, %s22
      %s26 = sphi 0, %s23
      %s27 = sphi 0, %s24
      %s28 = sphi 0, %s25
      %s44 = sphi 0, %s46
      %s47 = sphi 0, %s44
      %s48 = sphi 0, %s47
      %s64 = sphi 0, %s48
      %s72 = sphi 0, %s74
      %s75 = sphi 0, %s72
      %s76 = sphi 0, %s75
      %s92 = sphi 0, %s76
      %s98 = sphi 0, %s100
      %s101 = sphi 0, %s98
      %s102 = sphi 0, %s101
      %s118 = sphi 0, %s102
      %s124 = sphi 0, %s126
      %s127 = sphi 0, %s124
      %s128 = sphi 0, %s127
      %s144 = sphi 0, %s128
      %s152 = sphi 0, %s154
      %s155 = sphi 0, %s152
      %s156 = sphi 0, %s155
      %s172 = sphi 0, %s156
    $region4: #{_conv_bn_apply.1} parent=1 // loop_header_branch
      %16 = sbr.rel (%p14) target = $region8
    $region5: #{_conv_bn_apply.1} parent=1 // loop_body
      %s18 = ssub.s32 %s13, 1
      %s19 = ssub.s32 %s13, 2
      %s29 = sadd.s32 1, %s22
      %p30 = scmp.ge.s32.totalorder %s29, 1
      %s31 = scalar_select %p30, 0, %s29
      %s32 = sadd.s32 1, %s21
      %s33 = scalar_select %p30, %s32, %s21
      %p34 = scmp.ge.s32.totalorder %s33, 1
      %s35 = scalar_select %p34, 0, %s33
      %s36 = sadd.s32 1, %s20
      %s37 = scalar_select %p34, %s36, %s20
      %p38 = scmp.ge.s32.totalorder %s37, 2
      %s39 = scalar_select %p38, 0, %s37
      %s40 = ssub.s32 %s20, %s39
      %s41 = ssub.s32 %s22, %s31
      %s42 = sor.u32 %s40, %s41
      %p43 = scmp.eq.s32.totalorder %s42, 0
      %s45 = sadd.s32 %s44, 1
      %s46 = scalar_select %p43, %s44, %s45
      %p49 = pneg %p43
      %p50 = scmp.eq.s32.totalorder %s13, 1
      %p51 = por %p49, %p50
      %p52 = scmp.ne.s32.totalorder %s44, %s47
      %p53 = scmp.eq.s32.totalorder %s13, 0
      %p54 = por %p52, %p53
      %p55 = scmp.ne.s32.totalorder %s44, %s47
      %p56 = scmp.eq.s32.totalorder %s18, 1
      %p57 = por %p55, %p56
      %p58 = scmp.ne.s32.totalorder %s47, %s48
      %p59 = scmp.eq.s32.totalorder %s18, 0
      %p60 = por %p58, %p59
      %p61 = scmp.ne.s32.totalorder %s47, %s48
      %p62 = scmp.eq.s32.totalorder %s19, 1
      %p63 = por %p61, %p62
      %p65 = scmp.ne.s32.totalorder %s48, %s64
      %p66 = scmp.eq.s32.totalorder %s19, 0
      %p67 = por %p65, %p66
      %s68 = ssub.s32 %s22, %s31
      %s69 = ssub.s32 %s21, %s35
      %s70 = sor.u32 %s68, %s69
      %p71 = scmp.eq.s32.totalorder %s70, 0
      %s73 = sadd.s32 %s72, 1
      %s74 = scalar_select %p71, %s72, %s73
      %p77 = pneg %p71
      %p78 = scmp.eq.s32.totalorder %s13, 1
      %p79 = por %p77, %p78
      %p80 = scmp.ne.s32.totalorder %s72, %s75
      %p81 = scmp.eq.s32.totalorder %s13, 0
      %p82 = por %p80, %p81
      %p83 = scmp.ne.s32.totalorder %s72, %s75
      %p84 = scmp.eq.s32.totalorder %s18, 1
      %p85 = por %p83, %p84
      %p86 = scmp.ne.s32.totalorder %s75, %s76
      %p87 = scmp.eq.s32.totalorder %s18, 0
      %p88 = por %p86, %p87
      %p89 = scmp.ne.s32.totalorder %s75, %s76
      %p90 = scmp.eq.s32.totalorder %s19, 1
      %p91 = por %p89, %p90
      %p93 = scmp.ne.s32.totalorder %s76, %s92
      %p94 = scmp.eq.s32.totalorder %s19, 0
      %p95 = por %p93, %p94
      %s96 = ssub.s32 %s21, %s35
      %p97 = scmp.eq.s32.totalorder %s96, 0
      %s99 = sadd.s32 %s98, 1
      %s100 = scalar_select %p97, %s98, %s99
      %p103 = pneg %p97
      %p104 = scmp.eq.s32.totalorder %s13, 1
      %p105 = por %p103, %p104
      %p106 = scmp.ne.s32.totalorder %s98, %s101
      %p107 = scmp.eq.s32.totalorder %s13, 0
      %p108 = por %p106, %p107
      %p109 = scmp.ne.s32.totalorder %s98, %s101
      %p110 = scmp.eq.s32.totalorder %s18, 1
      %p111 = por %p109, %p110
      %p112 = scmp.ne.s32.totalorder %s101, %s102
      %p113 = scmp.eq.s32.totalorder %s18, 0
      %p114 = por %p112, %p113
      %p115 = scmp.ne.s32.totalorder %s101, %s102
      %p116 = scmp.eq.s32.totalorder %s19, 1
      %p117 = por %p115, %p116
      %p119 = scmp.ne.s32.totalorder %s102, %s118
      %p120 = scmp.eq.s32.totalorder %s19, 0
      %p121 = por %p119, %p120
      %s122 = ssub.s32 %s21, %s35
      %p123 = scmp.eq.s32.totalorder %s122, 0
      %s125 = sadd.s32 %s124, 1
      %s126 = scalar_select %p123, %s124, %s125
      %p129 = pneg %p123
      %p130 = scmp.eq.s32.totalorder %s13, 1
      %p131 = por %p129, %p130
      %p132 = scmp.ne.s32.totalorder %s124, %s127
      %p133 = scmp.eq.s32.totalorder %s13, 0
      %p134 = por %p132, %p133
      %p135 = scmp.ne.s32.totalorder %s124, %s127
      %p136 = scmp.eq.s32.totalorder %s18, 1
      %p137 = por %p135, %p136
      %p138 = scmp.ne.s32.totalorder %s127, %s128
      %p139 = scmp.eq.s32.totalorder %s18, 0
      %p140 = por %p138, %p139
      %p141 = scmp.ne.s32.totalorder %s127, %s128
      %p142 = scmp.eq.s32.totalorder %s19, 1
      %p143 = por %p141, %p142
      %p145 = scmp.ne.s32.totalorder %s128, %s144
      %p146 = scmp.eq.s32.totalorder %s19, 0
      %p147 = por %p145, %p146
      %s148 = ssub.s32 %s20, %s39
      %s149 = ssub.s32 %s21, %s35
      %s150 = sor.u32 %s148, %s149
      %p151 = scmp.eq.s32.totalorder %s150, 0
      %s153 = sadd.s32 %s152, 1
      %s154 = scalar_select %p151, %s152, %s153
      %p157 = pneg %p151
      %p158 = scmp.eq.s32.totalorder %s13, 1
      %p159 = por %p157, %p158
      %p160 = scmp.ne.s32.totalorder %s152, %s155
      %p161 = scmp.eq.s32.totalorder %s13, 0
      %p162 = por %p160, %p161
      %p163 = scmp.ne.s32.totalorder %s152, %s155
      %p164 = scmp.eq.s32.totalorder %s18, 1
      %p165 = por %p163, %p164
      %p166 = scmp.ne.s32.totalorder %s155, %s156
      %p167 = scmp.eq.s32.totalorder %s18, 0
      %p168 = por %p166, %p167
      %p169 = scmp.ne.s32.totalorder %s155, %s156
      %p170 = scmp.eq.s32.totalorder %s19, 1
      %p171 = por %p169, %p170
      %p173 = scmp.ne.s32.totalorder %s156, %s172
      %p174 = scmp.eq.s32.totalorder %s19, 0
      %p175 = por %p173, %p174
      %p176 = scmp.le.s32.totalorder 1, %s13
      %p177 = scmp.lt.s32.totalorder %s13, 3
      %p178 = pnand %p176, %p177
      %p179 = pneg %p178
      // Predicated region
      $region9: #{_conv_bn_apply.1} parent=5 // pred_check
        _
      $region10: #{_conv_bn_apply.1} parent=5 // pred_check_branch
        %181 = sbr.rel (%p178) target = $region12
      $region11: #{_conv_bn_apply.1} parent=5 // pred_region
        %s182 = ssub.s32 %s13, 1
        // Predicated region
        $region13: #{_conv_bn_apply.1} parent=11 // pred_check
          %p183 = pneg %p88
        $region14: #{_conv_bn_apply.1} parent=11 // pred_check_branch
          %185 = sbr.rel (%p183) target = $region16
        $region15: #{_conv_bn_apply.1} parent=11 // pred_region
          %s186 = smul.u32 32, %s25
          %p187 = scmp.lt.s32.totalorder %s186, 31
          %s188 = scalar_select %p187, %s186, 31
          %p189 = scmp.lt.s32.totalorder %s24, 0
          %s190 = scalar_select %p189, %s24, 0
          %s191 = sadd.s32 %s190, %s188
          %s192 = smul.addr %s191, 4
          %s193 = scalar_lea.vmem %s1, %s192
          %s194 = smul.u32 32, %s25
        $region16: #{_conv_bn_apply.1} parent=11 // pred_fallthru
          _
        // Predicated region
        $region17: #{_conv_bn_apply.1} parent=11 // pred_check
          %p195 = pneg %p114
        $region18: #{_conv_bn_apply.1} parent=11 // pred_check_branch
          %197 = sbr.rel (%p195) target = $region20
        $region19: #{_conv_bn_apply.1} parent=11 // pred_region
          %p198 = scmp.lt.s32.totalorder %s24, 0
          %s199 = scalar_select %p198, %s24, 0
          %s200 = scalar_lea.vmem %s2, %s199
        $region20: #{_conv_bn_apply.1} parent=11 // pred_fallthru
          _
        // Predicated region
        $region21: #{_conv_bn_apply.1} parent=11 // pred_check
          %p201 = pneg %p140
        $region22: #{_conv_bn_apply.1} parent=11 // pred_check_branch
          %203 = sbr.rel (%p201) target = $region24
        $region23: #{_conv_bn_apply.1} parent=11 // pred_region
          %p204 = scmp.lt.s32.totalorder %s24, 0
          %s205 = scalar_select %p204, %s24, 0
          %s206 = scalar_lea.vmem %s3, %s205
        $region24: #{_conv_bn_apply.1} parent=11 // pred_fallthru
          _
      $region12: #{_conv_bn_apply.1} parent=5 // pred_fallthru
        _
      %p207 = scmp.lt.s32.totalorder %s13, 2
      // Predicated region
      $region25: #{_conv_bn_apply.1} parent=5 // pred_check
        %p208 = pneg %p207
      $region26: #{_conv_bn_apply.1} parent=5 // pred_check_branch
        %210 = sbr.rel (%p208) target = $region28
      $region27: #{_conv_bn_apply.1} parent=5 // pred_region
        // Predicated region
        $region29: #{_conv_bn_apply.1} parent=27 // pred_check
          %p211 = pneg %p54
        $region30: #{_conv_bn_apply.1} parent=27 // pred_check_branch
          %213 = sbr.rel (%p211) target = $region32
        $region31: #{_conv_bn_apply.1} parent=27 // pred_region
          %s214 = smul.u32 32, %s20
          %s215 = smul.u32 2, %s22
          %p216 = scmp.lt.s32.totalorder %s214, 63
          %s217 = scalar_select %p216, %s214, 63
          %p218 = scmp.lt.s32.totalorder %s215, 1
          %s219 = scalar_select %p218, %s215, 1
          %s220 = smul.addr %s217, 2
          %s221 = sadd.s32 %s219, %s220
          %s222 = smul.addr %s221, 4
          %s223 = scalar_lea.vmem %s0, %s222
          %s224 = smul.u32 32, %s20
          %s225 = smul.u32 2, %s22
        $region32: #{_conv_bn_apply.1} parent=27 // pred_fallthru
          _
      $region28: #{_conv_bn_apply.1} parent=5 // pred_fallthru
        _
      %p226 = scmp.le.s32.totalorder 1, %s13
      %p227 = scmp.lt.s32.totalorder %s13, 3
      %p228 = pnand %p226, %p227
      %p229 = pneg %p228
      // Predicated region
      $region33: #{_conv_bn_apply.1} parent=5 // pred_check
        _
      $region34: #{_conv_bn_apply.1} parent=5 // pred_check_branch
        %231 = sbr.rel (%p228) target = $region36
      $region35: #{_conv_bn_apply.1} parent=5 // pred_region
        %s232 = ssub.s32 %s13, 1
        %s233 = smul.u32 32, %s23
        %s234 = smul.u32 2, %s25
        %p235 = scmp.lt.s32.totalorder %s233, 63
        %s236 = scalar_select %p235, %s233, 63
        %p237 = scmp.lt.s32.totalorder %s234, 1
        %s238 = scalar_select %p237, %s234, 1
        %s239 = smul.addr %s236, 2
        %s240 = sadd.s32 %s238, %s239
        %s241 = smul.addr %s240, 4
        %s242 = scalar_lea.vmem %s0, %s241
        %p243 = pneg %p60
        %p244 = pneg %p57
        %s245 = smul.u32 32, %s25
        %p246 = scmp.lt.s32.totalorder %s245, 31
        %s247 = scalar_select %p246, %s245, 31
        %p248 = scmp.lt.s32.totalorder %s24, 0
        %s249 = scalar_select %p248, %s24, 0
        %s250 = sadd.s32 %s249, %s247
        %s251 = smul.addr %s250, 4
        %s252 = scalar_lea.vmem %s1, %s251
        %p253 = pneg %p88
        %p254 = pneg %p85
        %p255 = scmp.lt.s32.totalorder %s24, 0
        %s256 = scalar_select %p255, %s24, 0
        %s257 = scalar_lea.vmem %s2, %s256
        %p258 = pneg %p114
        %p259 = pneg %p111
        %p260 = scmp.lt.s32.totalorder %s24, 0
        %s261 = scalar_select %p260, %s24, 0
        %s262 = scalar_lea.vmem %s3, %s261
        %p263 = pneg %p140
        %p264 = pneg %p137
        %p265 = pneg %p168
        %p266 = pneg %p165
        %s267 = sand.u32 %s155, 1
        %s268 = scalar_lea.sflag [#allocation4], %s267
        %s269 = sand.u32 %s155, 1
        %s270 = smul.addr %s269, 128
        %s271 = scalar_lea.vmem [#allocation3], %s270
        %s272 = smul.u32 32, %s23
        %s273 = smul.u32 2, %s25
        %p274 = scmp.lt.s32.totalorder %s272, 63
        %s275 = scalar_select %p274, %s272, 63
        %p276 = scmp.lt.s32.totalorder %s273, 1
        %s277 = scalar_select %p276, %s273, 1
        %s278 = smul.addr %s275, 2
        %s279 = sadd.s32 %s277, %s278
        %s280 = smul.addr %s279, 4
        %s281 = scalar_lea.vmem %s0, %s280
        %s282 = smul.u32 32, %s23
        %s283 = smul.u32 2, %s25
        %s284 = smul.u32 32, %s25
        %p285 = scmp.lt.s32.totalorder %s284, 31
        %s286 = scalar_select %p285, %s284, 31
        %p287 = scmp.lt.s32.totalorder %s24, 0
        %s288 = scalar_select %p287, %s24, 0
        %s289 = sadd.s32 %s288, %s286
        %s290 = smul.addr %s289, 4
        %s291 = scalar_lea.vmem %s1, %s290
        %s292 = smul.u32 32, %s25
        %p293 = scmp.lt.s32.totalorder %s24, 0
        %s294 = scalar_select %p293, %s24, 0
        %s295 = scalar_lea.vmem %s2, %s294
        %p296 = scmp.lt.s32.totalorder %s24, 0
        %s297 = scalar_select %p296, %s24, 0
        %s298 = scalar_lea.vmem %s3, %s297
        %s299 = smul.u32 32, %s23
        %p301 = scmp.eq.s32.totalorder %s25, 0
        // Predicated region
        $region37: #{_conv_bn_apply.1} parent=35 // pred_check
          %p302 = pneg %p301
        $region38: #{_conv_bn_apply.1} parent=35 // pred_check_branch
          %304 = sbr.rel (%p302) target = $region40
        $region39: #{_conv_bn_apply.1} parent=35 // pred_region
          %305 = vst [vmem:[#allocation2] sm:$0xff] 0.0
          %306 = vst [vmem:[#allocation2 + $0x8] sm:$0xff] 0.0
          %307 = vst [vmem:[#allocation2 + $0x10] sm:$0xff] 0.0
          %308 = vst [vmem:[#allocation2 + $0x18] sm:$0xff] 0.0
          %309 = vst [vmem:[#allocation2 + $0x20] sm:$0xff] 0.0
          %310 = vst [vmem:[#allocation2 + $0x28] sm:$0xff] 0.0
          %311 = vst [vmem:[#allocation2 + $0x30] sm:$0xff] 0.0
          %312 = vst [vmem:[#allocation2 + $0x38] sm:$0xff] 0.0
          %313 = vst [vmem:[#allocation2 + $0x40] sm:$0xff] 0.0
          %314 = vst [vmem:[#allocation2 + $0x48] sm:$0xff] 0.0
          %315 = vst [vmem:[#allocation2 + $0x50] sm:$0xff] 0.0
          %316 = vst [vmem:[#allocation2 + $0x58] sm:$0xff] 0.0
          %317 = vst [vmem:[#allocation2 + $0x60] sm:$0xff] 0.0
          %318 = vst [vmem:[#allocation2 + $0x68] sm:$0xff] 0.0
          %319 = vst [vmem:[#allocation2 + $0x70] sm:$0xff] 0.0
          %320 = vst [vmem:[#allocation2 + $0x78] sm:$0xff] 0.0
          %321 = vst [vmem:[#allocation2 + $0x80] sm:$0xff] 0.0
          %322 = vst [vmem:[#allocation2 + $0x88] sm:$0xff] 0.0
          %323 = vst [vmem:[#allocation2 + $0x90] sm:$0xff] 0.0
          %324 = vst [vmem:[#allocation2 + $0x98] sm:$0xff] 0.0
          %325 = vst [vmem:[#allocation2 + $0xa0] sm:$0xff] 0.0
          %326 = vst [vmem:[#allocation2 + $0xa8] sm:$0xff] 0.0
          %327 = vst [vmem:[#allocation2 + $0xb0] sm:$0xff] 0.0
          %328 = vst [vmem:[#allocation2 + $0xb8] sm:$0xff] 0.0
          %329 = vst [vmem:[#allocation2 + $0xc0] sm:$0xff] 0.0
          %330 = vst [vmem:[#allocation2 + $0xc8] sm:$0xff] 0.0
          %331 = vst [vmem:[#allocation2 + $0xd0] sm:$0xff] 0.0
          %332 = vst [vmem:[#allocation2 + $0xd8] sm:$0xff] 0.0
          %333 = vst [vmem:[#allocation2 + $0xe0] sm:$0xff] 0.0
          %334 = vst [vmem:[#allocation2 + $0xe8] sm:$0xff] 0.0
          %335 = vst [vmem:[#allocation2 + $0xf0] sm:$0xff] 0.0
          %336 = vst [vmem:[#allocation2 + $0xf8] sm:$0xff] 0.0
        $region40: #{_conv_bn_apply.1} parent=35 // pred_fallthru
          _
        %v337 = vld [vmem:[#allocation2] sm:$0xff]
        %v338 = vld [vmem:[#allocation2 + $0x8] sm:$0xff]
        %v339 = vld [vmem:[#allocation2 + $0x10] sm:$0xff]
        %v340 = vld [vmem:[#allocation2 + $0x18] sm:$0xff]
        %v341 = vld [vmem:[#allocation2 + $0x20] sm:$0xff]
        %v342 = vld [vmem:[#allocation2 + $0x28] sm:$0xff]
        %v343 = vld [vmem:[#allocation2 + $0x30] sm:$0xff]
        %v344 = vld [vmem:[#allocation2 + $0x38] sm:$0xff]
        %v345 = vld [vmem:[#allocation2 + $0x40] sm:$0xff]
        %v346 = vld [vmem:[#allocation2 + $0x48] sm:$0xff]
        %v347 = vld [vmem:[#allocation2 + $0x50] sm:$0xff]
        %v348 = vld [vmem:[#allocation2 + $0x58] sm:$0xff]
        %v349 = vld [vmem:[#allocation2 + $0x60] sm:$0xff]
        %v350 = vld [vmem:[#allocation2 + $0x68] sm:$0xff]
        %v351 = vld [vmem:[#allocation2 + $0x70] sm:$0xff]
        %v352 = vld [vmem:[#allocation2 + $0x78] sm:$0xff]
        %v353 = vld [vmem:[#allocation2 + $0x80] sm:$0xff]
        %v354 = vld [vmem:[#allocation2 + $0x88] sm:$0xff]
        %v355 = vld [vmem:[#allocation2 + $0x90] sm:$0xff]
        %v356 = vld [vmem:[#allocation2 + $0x98] sm:$0xff]
        %v357 = vld [vmem:[#allocation2 + $0xa0] sm:$0xff]
        %v358 = vld [vmem:[#allocation2 + $0xa8] sm:$0xff]
        %v359 = vld [vmem:[#allocation2 + $0xb0] sm:$0xff]
        %v360 = vld [vmem:[#allocation2 + $0xb8] sm:$0xff]
        %v361 = vld [vmem:[#allocation2 + $0xc0] sm:$0xff]
        %v362 = vld [vmem:[#allocation2 + $0xc8] sm:$0xff]
        %v363 = vld [vmem:[#allocation2 + $0xd0] sm:$0xff]
        %v364 = vld [vmem:[#allocation2 + $0xd8] sm:$0xff]
        %v365 = vld [vmem:[#allocation2 + $0xe0] sm:$0xff]
        %v366 = vld [vmem:[#allocation2 + $0xe8] sm:$0xff]
        %v367 = vld [vmem:[#allocation2 + $0xf0] sm:$0xff]
        %v368 = vld [vmem:[#allocation2 + $0xf8] sm:$0xff]
        %v369 = vld [vmem:[%s281] sm:$0xff]
        %v370 = vld [vmem:[%s281 + $0x8] sm:$0xff]
        %v371 = vld [vmem:[%s281 + $0x10] sm:$0xff]
        %v372 = vld [vmem:[%s281 + $0x18] sm:$0xff]
        %v373 = vld [vmem:[%s281 + $0x20] sm:$0xff]
        %v374 = vld [vmem:[%s281 + $0x28] sm:$0xff]
        %v375 = vld [vmem:[%s281 + $0x30] sm:$0xff]
        %v376 = vld [vmem:[%s281 + $0x38] sm:$0xff]
        %v377 = vld [vmem:[%s281 + $0x40] sm:$0xff]
        %v378 = vld [vmem:[%s281 + $0x48] sm:$0xff]
        %v379 = vld [vmem:[%s281 + $0x50] sm:$0xff]
        %v380 = vld [vmem:[%s281 + $0x58] sm:$0xff]
        %v381 = vld [vmem:[%s281 + $0x60] sm:$0xff]
        %v382 = vld [vmem:[%s281 + $0x68] sm:$0xff]
        %v383 = vld [vmem:[%s281 + $0x70] sm:$0xff]
        %v384 = vld [vmem:[%s281 + $0x78] sm:$0xff]
        %v385 = vld [vmem:[%s281 + $0x80] sm:$0xff]
        %v386 = vld [vmem:[%s281 + $0x88] sm:$0xff]
        %v387 = vld [vmem:[%s281 + $0x90] sm:$0xff]
        %v388 = vld [vmem:[%s281 + $0x98] sm:$0xff]
        %v389 = vld [vmem:[%s281 + $0xa0] sm:$0xff]
        %v390 = vld [vmem:[%s281 + $0xa8] sm:$0xff]
        %v391 = vld [vmem:[%s281 + $0xb0] sm:$0xff]
        %v392 = vld [vmem:[%s281 + $0xb8] sm:$0xff]
        %v393 = vld [vmem:[%s281 + $0xc0] sm:$0xff]
        %v394 = vld [vmem:[%s281 + $0xc8] sm:$0xff]
        %v395 = vld [vmem:[%s281 + $0xd0] sm:$0xff]
        %v396 = vld [vmem:[%s281 + $0xd8] sm:$0xff]
        %v397 = vld [vmem:[%s281 + $0xe0] sm:$0xff]
        %v398 = vld [vmem:[%s281 + $0xe8] sm:$0xff]
        %v399 = vld [vmem:[%s281 + $0xf0] sm:$0xff]
        %v400 = vld [vmem:[%s281 + $0xf8] sm:$0xff]
        %v401 = vld [vmem:[%s291] sm:$0xf]
        %v402 = vld [vmem:[%s291 + $0x4] sm:$0xf]
        %v403 = vld [vmem:[%s291 + $0x8] sm:$0xf]
        %v404 = vld [vmem:[%s291 + $0xc] sm:$0xf]
        %v405 = vld [vmem:[%s291 + $0x10] sm:$0xf]
        %v406 = vld [vmem:[%s291 + $0x14] sm:$0xf]
        %v407 = vld [vmem:[%s291 + $0x18] sm:$0xf]
        %v408 = vld [vmem:[%s291 + $0x1c] sm:$0xf]
        %v409 = vld [vmem:[%s291 + $0x20] sm:$0xf]
        %v410 = vld [vmem:[%s291 + $0x24] sm:$0xf]
        %v411 = vld [vmem:[%s291 + $0x28] sm:$0xf]
        %v412 = vld [vmem:[%s291 + $0x2c] sm:$0xf]
        %v413 = vld [vmem:[%s291 + $0x30] sm:$0xf]
        %v414 = vld [vmem:[%s291 + $0x34] sm:$0xf]
        %v415 = vld [vmem:[%s291 + $0x38] sm:$0xf]
        %v416 = vld [vmem:[%s291 + $0x3c] sm:$0xf]
        %v417 = vld [vmem:[%s291 + $0x40] sm:$0xf]
        %v418 = vld [vmem:[%s291 + $0x44] sm:$0xf]
        %v419 = vld [vmem:[%s291 + $0x48] sm:$0xf]
        %v420 = vld [vmem:[%s291 + $0x4c] sm:$0xf]
        %v421 = vld [vmem:[%s291 + $0x50] sm:$0xf]
        %v422 = vld [vmem:[%s291 + $0x54] sm:$0xf]
        %v423 = vld [vmem:[%s291 + $0x58] sm:$0xf]
        %v424 = vld [vmem:[%s291 + $0x5c] sm:$0xf]
        %v425 = vld [vmem:[%s291 + $0x60] sm:$0xf]
        %v426 = vld [vmem:[%s291 + $0x64] sm:$0xf]
        %v427 = vld [vmem:[%s291 + $0x68] sm:$0xf]
        %v428 = vld [vmem:[%s291 + $0x6c] sm:$0xf]
        %v429 = vld [vmem:[%s291 + $0x70] sm:$0xf]
        %v430 = vld [vmem:[%s291 + $0x74] sm:$0xf]
        %v431 = vld [vmem:[%s291 + $0x78] sm:$0xf]
        %v432 = vld [vmem:[%s291 + $0x7c] sm:$0xf]
        %v465 = vunpack.c.l.b16 %v369
        %v466 = vunpack.c.h.b16 %v369
        %v467 = vunpack.c.l.b16 %v370
        %v468 = vunpack.c.h.b16 %v370
        %v469 = vunpack.c.l.b16 %v371
        %v470 = vunpack.c.h.b16 %v371
        %v471 = vunpack.c.l.b16 %v372
        %v472 = vunpack.c.h.b16 %v372
        %v473 = vunpack.c.l.b16 %v373
        %v474 = vunpack.c.h.b16 %v373
        %v475 = vunpack.c.l.b16 %v374
        %v476 = vunpack.c.h.b16 %v374
        %v477 = vunpack.c.l.b16 %v375
        %v478 = vunpack.c.h.b16 %v375
        %v479 = vunpack.c.l.b16 %v376
        %v480 = vunpack.c.h.b16 %v376
        %v481 = vunpack.c.l.b16 %v377
        %v482 = vunpack.c.h.b16 %v377
        %v483 = vunpack.c.l.b16 %v378
        %v484 = vunpack.c.h.b16 %v378
        %v485 = vunpack.c.l.b16 %v379
        %v486 = vunpack.c.h.b16 %v379
        %v487 = vunpack.c.l.b16 %v380
        %v488 = vunpack.c.h.b16 %v380
        %v489 = vunpack.c.l.b16 %v381
        %v490 = vunpack.c.h.b16 %v381
        %v491 = vunpack.c.l.b16 %v382
        %v492 = vunpack.c.h.b16 %v382
        %v493 = vunpack.c.l.b16 %v383
        %v494 = vunpack.c.h.b16 %v383
        %v495 = vunpack.c.l.b16 %v384
        %v496 = vunpack.c.h.b16 %v384
        %v497 = vunpack.c.l.b16 %v385
        %v498 = vunpack.c.h.b16 %v385
        %v499 = vunpack.c.l.b16 %v386
        %v500 = vunpack.c.h.b16 %v386
        %v501 = vunpack.c.l.b16 %v387
        %v502 = vunpack.c.h.b16 %v387
        %v503 = vunpack.c.l.b16 %v388
        %v504 = vunpack.c.h.b16 %v388
        %v505 = vunpack.c.l.b16 %v389
        %v506 = vunpack.c.h.b16 %v389
        %v507 = vunpack.c.l.b16 %v390
        %v508 = vunpack.c.h.b16 %v390
        %v509 = vunpack.c.l.b16 %v391
        %v510 = vunpack.c.h.b16 %v391
        %v511 = vunpack.c.l.b16 %v392
        %v512 = vunpack.c.h.b16 %v392
        %v513 = vunpack.c.l.b16 %v393
        %v514 = vunpack.c.h.b16 %v393
        %v515 = vunpack.c.l.b16 %v394
        %v516 = vunpack.c.h.b16 %v394
        %v517 = vunpack.c.l.b16 %v395
        %v518 = vunpack.c.h.b16 %v395
        %v519 = vunpack.c.l.b16 %v396
        %v520 = vunpack.c.h.b16 %v396
        %v521 = vunpack.c.l.b16 %v397
        %v522 = vunpack.c.h.b16 %v397
        %v523 = vunpack.c.l.b16 %v398
        %v524 = vunpack.c.h.b16 %v398
        %v525 = vunpack.c.l.b16 %v399
        %v526 = vunpack.c.h.b16 %v399
        %v527 = vunpack.c.l.b16 %v400
        %v528 = vunpack.c.h.b16 %v400
        %v529 = vpack.c.b16 %v467, %v465
        %v530 = vpack.c.b16 %v468, %v466
        %v531 = vpack.c.b16 %v471, %v469
        %v532 = vpack.c.b16 %v472, %v470
        %v533 = vpack.c.b16 %v475, %v473
        %v534 = vpack.c.b16 %v476, %v474
        %v535 = vpack.c.b16 %v479, %v477
        %v536 = vpack.c.b16 %v480, %v478
        %v537 = vpack.c.b16 %v483, %v481
        %v538 = vpack.c.b16 %v484, %v482
        %v539 = vpack.c.b16 %v487, %v485
        %v540 = vpack.c.b16 %v488, %v486
        %v541 = vpack.c.b16 %v491, %v489
        %v542 = vpack.c.b16 %v492, %v490
        %v543 = vpack.c.b16 %v495, %v493
        %v544 = vpack.c.b16 %v496, %v494
        %v545 = vpack.c.b16 %v499, %v497
        %v546 = vpack.c.b16 %v500, %v498
        %v547 = vpack.c.b16 %v503, %v501
        %v548 = vpack.c.b16 %v504, %v502
        %v549 = vpack.c.b16 %v507, %v505
        %v550 = vpack.c.b16 %v508, %v506
        %v551 = vpack.c.b16 %v511, %v509
        %v552 = vpack.c.b16 %v512, %v510
        %v553 = vpack.c.b16 %v515, %v513
        %v554 = vpack.c.b16 %v516, %v514
        %v555 = vpack.c.b16 %v519, %v517
        %v556 = vpack.c.b16 %v520, %v518
        %v557 = vpack.c.b16 %v523, %v521
        %v558 = vpack.c.b16 %v524, %v522
        %v559 = vpack.c.b16 %v527, %v525
        %v560 = vpack.c.b16 %v528, %v526
        %v625 = vunpack.c.l.b16 %v401
        %v626 = vunpack.c.l.b16 %v402
        %v627 = vunpack.c.l.b16 %v403
        %v628 = vunpack.c.l.b16 %v404
        %v629 = vunpack.c.l.b16 %v405
        %v630 = vunpack.c.l.b16 %v406
        %v631 = vunpack.c.l.b16 %v407
        %v632 = vunpack.c.l.b16 %v408
        %v633 = vunpack.c.l.b16 %v409
        %v634 = vunpack.c.l.b16 %v410
        %v635 = vunpack.c.l.b16 %v411
        %v636 = vunpack.c.l.b16 %v412
        %v637 = vunpack.c.l.b16 %v413
        %v638 = vunpack.c.l.b16 %v414
        %v639 = vunpack.c.l.b16 %v415
        %v640 = vunpack.c.l.b16 %v416
        %v641 = vunpack.c.l.b16 %v417
        %v642 = vunpack.c.l.b16 %v418
        %v643 = vunpack.c.l.b16 %v419
        %v644 = vunpack.c.l.b16 %v420
        %v645 = vunpack.c.l.b16 %v421
        %v646 = vunpack.c.l.b16 %v422
        %v647 = vunpack.c.l.b16 %v423
        %v648 = vunpack.c.l.b16 %v424
        %v649 = vunpack.c.l.b16 %v425
        %v650 = vunpack.c.l.b16 %v426
        %v651 = vunpack.c.l.b16 %v427
        %v652 = vunpack.c.l.b16 %v428
        %v653 = vunpack.c.l.b16 %v429
        %v654 = vunpack.c.l.b16 %v430
        %v655 = vunpack.c.l.b16 %v431
        %v656 = vunpack.c.l.b16 %v432
        %v657 = vpack.c.b16 %v626, %v625
        %v658 = vpack.c.b16 %v628, %v627
        %v659 = vpack.c.b16 %v630, %v629
        %v660 = vpack.c.b16 %v632, %v631
        %v661 = vpack.c.b16 %v634, %v633
        %v662 = vpack.c.b16 %v636, %v635
        %v663 = vpack.c.b16 %v638, %v637
        %v664 = vpack.c.b16 %v640, %v639
        %v665 = vpack.c.b16 %v642, %v641
        %v666 = vpack.c.b16 %v644, %v643
        %v667 = vpack.c.b16 %v646, %v645
        %v668 = vpack.c.b16 %v648, %v647
        %v669 = vpack.c.b16 %v650, %v649
        %v670 = vpack.c.b16 %v652, %v651
        %v671 = vpack.c.b16 %v654, %v653
        %v672 = vpack.c.b16 %v656, %v655
        %689 = vmatprep.subr.bf16.mxu0 0
        %690 = vmatpush1.bf16.msra.mxu0 %v657
        %691 = vmatprep.subr.bf16.mxu0 0
        %692 = vmatpush1.bf16.msra.mxu0 %v658
        %693 = vmatprep.subr.bf16.mxu0 0
        %694 = vmatpush1.bf16.msra.mxu0 %v659
        %695 = vmatprep.subr.bf16.mxu0 0
        %696 = vmatpush1.bf16.msra.mxu0 %v660
        %697 = vmatprep.subr.bf16.mxu0 0
        %698 = vmatpush1.bf16.msra.mxu0 %v661
        %699 = vmatprep.subr.bf16.mxu0 0
        %700 = vmatpush1.bf16.msra.mxu0 %v662
        %701 = vmatprep.subr.bf16.mxu0 0
        %702 = vmatpush1.bf16.msra.mxu0 %v663
        %703 = vmatprep.subr.bf16.mxu0 0
        %704 = vmatpush1.bf16.msra.mxu0 %v664
        %705 = vmatprep.subr.bf16.mxu0 0
        %706 = vmatpush1.bf16.msra.mxu0 %v665
        %707 = vmatprep.subr.bf16.mxu0 0
        %708 = vmatpush1.bf16.msra.mxu0 %v666
        %709 = vmatprep.subr.bf16.mxu0 0
        %710 = vmatpush1.bf16.msra.mxu0 %v667
        %711 = vmatprep.subr.bf16.mxu0 0
        %712 = vmatpush1.bf16.msra.mxu0 %v668
        %713 = vmatprep.subr.bf16.mxu0 0
        %714 = vmatpush1.bf16.msra.mxu0 %v669
        %715 = vmatprep.subr.bf16.mxu0 0
        %716 = vmatpush1.bf16.msra.mxu0 %v670
        %717 = vmatprep.subr.bf16.mxu0 0
        %718 = vmatpush1.bf16.msra.mxu0 %v671
        %719 = vmatprep.subr.bf16.mxu0 0
        %720 = vmatpush1.bf16.msra.mxu0 %v672
        %721 = vmatprep.mubr.bf16.mxu0 %v530
        %722 = vmatmul.mubr.bf16.gmra.mrb[0].mxu0 %v529
        %v723 = vpop.f32.mrb[0].mxu0
        %v724 = vadd.f32 0.0, %v723
        %v725 = vpop.f32.mrb[0].mxu0
        %v726 = vpop.f32.mrb[0].mxu0
        %v727 = vadd.f32 0.0, %v726
        %v728 = vpop.f32.mrb[0].mxu0
        %729 = vmatprep.mubr.bf16.mxu0 %v532
        %730 = vmatmul.mubr.bf16.gmra.mrb[0].mxu0 %v531
        %v731 = vpop.f32.mrb[0].mxu0
        %v732 = vadd.f32 0.0, %v731
        %v733 = vpop.f32.mrb[0].mxu0
        %v734 = vpop.f32.mrb[0].mxu0
        %v735 = vadd.f32 0.0, %v734
        %v736 = vpop.f32.mrb[0].mxu0
        %737 = vmatprep.mubr.bf16.mxu0 %v534
        %738 = vmatmul.mubr.bf16.gmra.mrb[0].mxu0 %v533
        %v739 = vpop.f32.mrb[0].mxu0
        %v740 = vadd.f32 0.0, %v739
        %v741 = vpop.f32.mrb[0].mxu0
        %v742 = vpop.f32.mrb[0].mxu0
        %v743 = vadd.f32 0.0, %v742
        %v744 = vpop.f32.mrb[0].mxu0
        %745 = vmatprep.mubr.bf16.mxu0 %v536
        %746 = vmatmul.mubr.bf16.gmra.mrb[0].mxu0 %v535
        %v747 = vpop.f32.mrb[0].mxu0
        %v748 = vadd.f32 0.0, %v747
        %v749 = vpop.f32.mrb[0].mxu0
        %v750 = vpop.f32.mrb[0].mxu0
        %v751 = vadd.f32 0.0, %v750
        %v752 = vpop.f32.mrb[0].mxu0
        %753 = vmatprep.mubr.bf16.mxu0 %v538
        %754 = vmatmul.mubr.bf16.gmra.mrb[0].mxu0 %v537
        %v755 = vpop.f32.mrb[0].mxu0
        %v756 = vadd.f32 0.0, %v755
        %v757 = vpop.f32.mrb[0].mxu0
        %v758 = vpop.f32.mrb[0].mxu0
        %v759 = vadd.f32 0.0, %v758
        %v760 = vpop.f32.mrb[0].mxu0
        %761 = vmatprep.mubr.bf16.mxu0 %v540
        %762 = vmatmul.mubr.bf16.gmra.mrb[0].mxu0 %v539
        %v763 = vpop.f32.mrb[0].mxu0
        %v764 = vadd.f32 0.0, %v763
        %v765 = vpop.f32.mrb[0].mxu0
        %v766 = vpop.f32.mrb[0].mxu0
        %v767 = vadd.f32 0.0, %v766
        %v768 = vpop.f32.mrb[0].mxu0
        %769 = vmatprep.mubr.bf16.mxu0 %v542
        %770 = vmatmul.mubr.bf16.gmra.mrb[0].mxu0 %v541
        %v771 = vpop.f32.mrb[0].mxu0
        %v772 = vadd.f32 0.0, %v771
        %v773 = vpop.f32.mrb[0].mxu0
        %v774 = vpop.f32.mrb[0].mxu0
        %v775 = vadd.f32 0.0, %v774
        %v776 = vpop.f32.mrb[0].mxu0
        %777 = vmatprep.mubr.bf16.mxu0 %v544
        %778 = vmatmul.mubr.bf16.gmra.mrb[0].mxu0 %v543
        %v779 = vpop.f32.mrb[0].mxu0
        %v780 = vadd.f32 0.0, %v779
        %v781 = vpop.f32.mrb[0].mxu0
        %v782 = vpop.f32.mrb[0].mxu0
        %v783 = vadd.f32 0.0, %v782
        %v784 = vpop.f32.mrb[0].mxu0
        %785 = vmatprep.mubr.bf16.mxu0 %v546
        %786 = vmatmul.mubr.bf16.gmra.mrb[0].mxu0 %v545
        %v787 = vpop.f32.mrb[0].mxu0
        %v788 = vadd.f32 0.0, %v787
        %v789 = vpop.f32.mrb[0].mxu0
        %v790 = vpop.f32.mrb[0].mxu0
        %v791 = vadd.f32 0.0, %v790
        %v792 = vpop.f32.mrb[0].mxu0
        %793 = vmatprep.mubr.bf16.mxu0 %v548
        %794 = vmatmul.mubr.bf16.gmra.mrb[0].mxu0 %v547
        %v795 = vpop.f32.mrb[0].mxu0
        %v796 = vadd.f32 0.0, %v795
        %v797 = vpop.f32.mrb[0].mxu0
        %v798 = vpop.f32.mrb[0].mxu0
        %v799 = vadd.f32 0.0, %v798
        %v800 = vpop.f32.mrb[0].mxu0
        %801 = vmatprep.mubr.bf16.mxu0 %v550
        %802 = vmatmul.mubr.bf16.gmra.mrb[0].mxu0 %v549
        %v803 = vpop.f32.mrb[0].mxu0
        %v804 = vadd.f32 0.0, %v803
        %v805 = vpop.f32.mrb[0].mxu0
        %v806 = vpop.f32.mrb[0].mxu0
        %v807 = vadd.f32 0.0, %v806
        %v808 = vpop.f32.mrb[0].mxu0
        %809 = vmatprep.mubr.bf16.mxu0 %v552
        %810 = vmatmul.mubr.bf16.gmra.mrb[0].mxu0 %v551
        %v811 = vpop.f32.mrb[0].mxu0
        %v812 = vadd.f32 0.0, %v811
        %v813 = vpop.f32.mrb[0].mxu0
        %v814 = vpop.f32.mrb[0].mxu0
        %v815 = vadd.f32 0.0, %v814
        %v816 = vpop.f32.mrb[0].mxu0
        %817 = vmatprep.mubr.bf16.mxu0 %v554
        %818 = vmatmul.mubr.bf16.gmra.mrb[0].mxu0 %v553
        %v819 = vpop.f32.mrb[0].mxu0
        %v820 = vadd.f32 0.0, %v819
        %v821 = vpop.f32.mrb[0].mxu0
        %v822 = vpop.f32.mrb[0].mxu0
        %v823 = vadd.f32 0.0, %v822
        %v824 = vpop.f32.mrb[0].mxu0
        %825 = vmatprep.mubr.bf16.mxu0 %v556
        %826 = vmatmul.mubr.bf16.gmra.mrb[0].mxu0 %v555
        %v827 = vpop.f32.mrb[0].mxu0
        %v828 = vadd.f32 0.0, %v827
        %v829 = vpop.f32.mrb[0].mxu0
        %v830 = vpop.f32.mrb[0].mxu0
        %v831 = vadd.f32 0.0, %v830
        %v832 = vpop.f32.mrb[0].mxu0
        %833 = vmatprep.mubr.bf16.mxu0 %v558
        %834 = vmatmul.mubr.bf16.gmra.mrb[0].mxu0 %v557
        %v835 = vpop.f32.mrb[0].mxu0
        %v836 = vadd.f32 0.0, %v835
        %v837 = vpop.f32.mrb[0].mxu0
        %v838 = vpop.f32.mrb[0].mxu0
        %v839 = vadd.f32 0.0, %v838
        %v840 = vpop.f32.mrb[0].mxu0
        %841 = vmatprep.mubr.bf16.mxu0 %v560
        %842 = vmatmul.mubr.bf16.gmra.mrb[0].mxu0 %v559
        %v843 = vpop.f32.mrb[0].mxu0
        %v844 = vadd.f32 0.0, %v843
        %v845 = vpop.f32.mrb[0].mxu0
        %v846 = vpop.f32.mrb[0].mxu0
        %v847 = vadd.f32 0.0, %v846
        %v848 = vpop.f32.mrb[0].mxu0
        %849 = vdwg.mxu0
        %v850 = vadd.f32 %v337, %v724
        %v851 = vadd.f32 %v338, %v727
        %v852 = vadd.f32 %v339, %v732
        %v853 = vadd.f32 %v340, %v735
        %v854 = vadd.f32 %v341, %v740
        %v855 = vadd.f32 %v342, %v743
        %v856 = vadd.f32 %v343, %v748
        %v857 = vadd.f32 %v344, %v751
        %v858 = vadd.f32 %v345, %v756
        %v859 = vadd.f32 %v346, %v759
        %v860 = vadd.f32 %v347, %v764
        %v861 = vadd.f32 %v348, %v767
        %v862 = vadd.f32 %v349, %v772
        %v863 = vadd.f32 %v350, %v775
        %v864 = vadd.f32 %v351, %v780
        %v865 = vadd.f32 %v352, %v783
        %v866 = vadd.f32 %v353, %v788
        %v867 = vadd.f32 %v354, %v791
        %v868 = vadd.f32 %v355, %v796
        %v869 = vadd.f32 %v356, %v799
        %v870 = vadd.f32 %v357, %v804
        %v871 = vadd.f32 %v358, %v807
        %v872 = vadd.f32 %v359, %v812
        %v873 = vadd.f32 %v360, %v815
        %v874 = vadd.f32 %v361, %v820
        %v875 = vadd.f32 %v362, %v823
        %v876 = vadd.f32 %v363, %v828
        %v877 = vadd.f32 %v364, %v831
        %v878 = vadd.f32 %v365, %v836
        %v879 = vadd.f32 %v366, %v839
        %v880 = vadd.f32 %v367, %v844
        %v881 = vadd.f32 %v368, %v847
        %p882 = scmp.lt.s32.totalorder %s25, 0
        // Predicated region
        $region41: #{_conv_bn_apply.1} parent=35 // pred_check
          %p883 = pneg %p882
        $region42: #{_conv_bn_apply.1} parent=35 // pred_check_branch
          %885 = sbr.rel (%p883) target = $region44
        $region43: #{_conv_bn_apply.1} parent=35 // pred_region
          %886 = vst [vmem:[#allocation2] sm:$0xff] %v850
          %887 = vst [vmem:[#allocation2 + $0x8] sm:$0xff] %v851
          %888 = vst [vmem:[#allocation2 + $0x10] sm:$0xff] %v852
          %889 = vst [vmem:[#allocation2 + $0x18] sm:$0xff] %v853
          %890 = vst [vmem:[#allocation2 + $0x20] sm:$0xff] %v854
          %891 = vst [vmem:[#allocation2 + $0x28] sm:$0xff] %v855
          %892 = vst [vmem:[#allocation2 + $0x30] sm:$0xff] %v856
          %893 = vst [vmem:[#allocation2 + $0x38] sm:$0xff] %v857
          %894 = vst [vmem:[#allocation2 + $0x40] sm:$0xff] %v858
          %895 = vst [vmem:[#allocation2 + $0x48] sm:$0xff] %v859
          %896 = vst [vmem:[#allocation2 + $0x50] sm:$0xff] %v860
          %897 = vst [vmem:[#allocation2 + $0x58] sm:$0xff] %v861
          %898 = vst [vmem:[#allocation2 + $0x60] sm:$0xff] %v862
          %899 = vst [vmem:[#allocation2 + $0x68] sm:$0xff] %v863
          %900 = vst [vmem:[#allocation2 + $0x70] sm:$0xff] %v864
          %901 = vst [vmem:[#allocation2 + $0x78] sm:$0xff] %v865
          %902 = vst [vmem:[#allocation2 + $0x80] sm:$0xff] %v866
          %903 = vst [vmem:[#allocation2 + $0x88] sm:$0xff] %v867
          %904 = vst [vmem:[#allocation2 + $0x90] sm:$0xff] %v868
          %905 = vst [vmem:[#allocation2 + $0x98] sm:$0xff] %v869
          %906 = vst [vmem:[#allocation2 + $0xa0] sm:$0xff] %v870
          %907 = vst [vmem:[#allocation2 + $0xa8] sm:$0xff] %v871
          %908 = vst [vmem:[#allocation2 + $0xb0] sm:$0xff] %v872
          %909 = vst [vmem:[#allocation2 + $0xb8] sm:$0xff] %v873
          %910 = vst [vmem:[#allocation2 + $0xc0] sm:$0xff] %v874
          %911 = vst [vmem:[#allocation2 + $0xc8] sm:$0xff] %v875
          %912 = vst [vmem:[#allocation2 + $0xd0] sm:$0xff] %v876
          %913 = vst [vmem:[#allocation2 + $0xd8] sm:$0xff] %v877
          %914 = vst [vmem:[#allocation2 + $0xe0] sm:$0xff] %v878
          %915 = vst [vmem:[#allocation2 + $0xe8] sm:$0xff] %v879
          %916 = vst [vmem:[#allocation2 + $0xf0] sm:$0xff] %v880
          %917 = vst [vmem:[#allocation2 + $0xf8] sm:$0xff] %v881
        $region44: #{_conv_bn_apply.1} parent=35 // pred_fallthru
          _
        // Predicated region
        $region45: #{_conv_bn_apply.1} parent=35 // pred_check
          %p918 = pneg %p301
        $region46: #{_conv_bn_apply.1} parent=35 // pred_check_branch
          %920 = sbr.rel (%p918) target = $region48
        $region47: #{_conv_bn_apply.1} parent=35 // pred_region
          %v921 = vld [vmem:[%s295] sm:$0x1]
          %v923 = vlaneseq
          %v924 = vshrl.u32 %v923, 7
          %v925 = vsub.s32 0, %v924
          %v926 = vrot.slane %v921, %v925
          %v928 = vmul.f32 %v850, %v926
          %v929 = vmul.f32 %v851, %v926
          %v930 = vmul.f32 %v852, %v926
          %v931 = vmul.f32 %v853, %v926
          %v932 = vmul.f32 %v854, %v926
          %v933 = vmul.f32 %v855, %v926
          %v934 = vmul.f32 %v856, %v926
          %v935 = vmul.f32 %v857, %v926
          %v936 = vmul.f32 %v858, %v926
          %v937 = vmul.f32 %v859, %v926
          %v938 = vmul.f32 %v860, %v926
          %v939 = vmul.f32 %v861, %v926
          %v940 = vmul.f32 %v862, %v926
          %v941 = vmul.f32 %v863, %v926
          %v942 = vmul.f32 %v864, %v926
          %v943 = vmul.f32 %v865, %v926
          %v944 = vmul.f32 %v866, %v926
          %v945 = vmul.f32 %v867, %v926
          %v946 = vmul.f32 %v868, %v926
          %v947 = vmul.f32 %v869, %v926
          %v948 = vmul.f32 %v870, %v926
          %v949 = vmul.f32 %v871, %v926
          %v950 = vmul.f32 %v872, %v926
          %v951 = vmul.f32 %v873, %v926
          %v952 = vmul.f32 %v874, %v926
          %v953 = vmul.f32 %v875, %v926
          %v954 = vmul.f32 %v876, %v926
          %v955 = vmul.f32 %v877, %v926
          %v956 = vmul.f32 %v878, %v926
          %v957 = vmul.f32 %v879, %v926
          %v958 = vmul.f32 %v880, %v926
          %v959 = vmul.f32 %v881, %v926
          %v960 = vld [vmem:[%s298] sm:$0x1]
          %v962 = vlaneseq
          %v963 = vshrl.u32 %v962, 7
          %v964 = vsub.s32 0, %v963
          %v965 = vrot.slane %v960, %v964
          %v967 = vadd.f32 %v928, %v965
          %v968 = vadd.f32 %v929, %v965
          %v969 = vadd.f32 %v930, %v965
          %v970 = vadd.f32 %v931, %v965
          %v971 = vadd.f32 %v932, %v965
          %v972 = vadd.f32 %v933, %v965
          %v973 = vadd.f32 %v934, %v965
          %v974 = vadd.f32 %v935, %v965
          %v975 = vadd.f32 %v936, %v965
          %v976 = vadd.f32 %v937, %v965
          %v977 = vadd.f32 %v938, %v965
          %v978 = vadd.f32 %v939, %v965
          %v979 = vadd.f32 %v940, %v965
          %v980 = vadd.f32 %v941, %v965
          %v981 = vadd.f32 %v942, %v965
          %v982 = vadd.f32 %v943, %v965
          %v983 = vadd.f32 %v944, %v965
          %v984 = vadd.f32 %v945, %v965
          %v985 = vadd.f32 %v946, %v965
          %v986 = vadd.f32 %v947, %v965
          %v987 = vadd.f32 %v948, %v965
          %v988 = vadd.f32 %v949, %v965
          %v989 = vadd.f32 %v950, %v965
          %v990 = vadd.f32 %v951, %v965
          %v991 = vadd.f32 %v952, %v965
          %v992 = vadd.f32 %v953, %v965
          %v993 = vadd.f32 %v954, %v965
          %v994 = vadd.f32 %v955, %v965
          %v995 = vadd.f32 %v956, %v965
          %v996 = vadd.f32 %v957, %v965
          %v997 = vadd.f32 %v958, %v965
          %v998 = vadd.f32 %v959, %v965
          %v999 = vmax.f32 %v967, 0.0
          %v1000 = vmax.f32 %v968, 0.0
          %v1001 = vmax.f32 %v969, 0.0
          %v1002 = vmax.f32 %v970, 0.0
          %v1003 = vmax.f32 %v971, 0.0
          %v1004 = vmax.f32 %v972, 0.0
          %v1005 = vmax.f32 %v973, 0.0
          %v1006 = vmax.f32 %v974, 0.0
          %v1007 = vmax.f32 %v975, 0.0
          %v1008 = vmax.f32 %v976, 0.0
          %v1009 = vmax.f32 %v977, 0.0
          %v1010 = vmax.f32 %v978, 0.0
          %v1011 = vmax.f32 %v979, 0.0
          %v1012 = vmax.f32 %v980, 0.0
          %v1013 = vmax.f32 %v981, 0.0
          %v1014 = vmax.f32 %v982, 0.0
          %v1015 = vmax.f32 %v983, 0.0
          %v1016 = vmax.f32 %v984, 0.0
          %v1017 = vmax.f32 %v985, 0.0
          %v1018 = vmax.f32 %v986, 0.0
          %v1019 = vmax.f32 %v987, 0.0
          %v1020 = vmax.f32 %v988, 0.0
          %v1021 = vmax.f32 %v989, 0.0
          %v1022 = vmax.f32 %v990, 0.0
          %v1023 = vmax.f32 %v991, 0.0
          %v1024 = vmax.f32 %v992, 0.0
          %v1025 = vmax.f32 %v993, 0.0
          %v1026 = vmax.f32 %v994, 0.0
          %v1027 = vmax.f32 %v995, 0.0
          %v1028 = vmax.f32 %v996, 0.0
          %v1029 = vmax.f32 %v997, 0.0
          %v1030 = vmax.f32 %v998, 0.0
          %v1031 = vpack.c.bf16 %v1000, %v999
          %v1032 = vpack.c.bf16 %v1002, %v1001
          %v1033 = vpack.c.bf16 %v1004, %v1003
          %v1034 = vpack.c.bf16 %v1006, %v1005
          %v1035 = vpack.c.bf16 %v1008, %v1007
          %v1036 = vpack.c.bf16 %v1010, %v1009
          %v1037 = vpack.c.bf16 %v1012, %v1011
          %v1038 = vpack.c.bf16 %v1014, %v1013
          %v1039 = vpack.c.bf16 %v1016, %v1015
          %v1040 = vpack.c.bf16 %v1018, %v1017
          %v1041 = vpack.c.bf16 %v1020, %v1019
          %v1042 = vpack.c.bf16 %v1022, %v1021
          %v1043 = vpack.c.bf16 %v1024, %v1023
          %v1044 = vpack.c.bf16 %v1026, %v1025
          %v1045 = vpack.c.bf16 %v1028, %v1027
          %v1046 = vpack.c.bf16 %v1030, %v1029
          %v1063 = vunpack.c.l.b16 %v1031
          %v1064 = vunpack.c.h.b16 %v1031
          %v1065 = vunpack.c.l.b16 %v1032
          %v1066 = vunpack.c.h.b16 %v1032
          %v1067 = vunpack.c.l.b16 %v1033
          %v1068 = vunpack.c.h.b16 %v1033
          %v1069 = vunpack.c.l.b16 %v1034
          %v1070 = vunpack.c.h.b16 %v1034
          %v1071 = vunpack.c.l.b16 %v1035
          %v1072 = vunpack.c.h.b16 %v1035
          %v1073 = vunpack.c.l.b16 %v1036
          %v1074 = vunpack.c.h.b16 %v1036
          %v1075 = vunpack.c.l.b16 %v1037
          %v1076 = vunpack.c.h.b16 %v1037
          %v1077 = vunpack.c.l.b16 %v1038
          %v1078 = vunpack.c.h.b16 %v1038
          %v1079 = vunpack.c.l.b16 %v1039
          %v1080 = vunpack.c.h.b16 %v1039
          %v1081 = vunpack.c.l.b16 %v1040
          %v1082 = vunpack.c.h.b16 %v1040
          %v1083 = vunpack.c.l.b16 %v1041
          %v1084 = vunpack.c.h.b16 %v1041
          %v1085 = vunpack.c.l.b16 %v1042
          %v1086 = vunpack.c.h.b16 %v1042
          %v1087 = vunpack.c.l.b16 %v1043
          %v1088 = vunpack.c.h.b16 %v1043
          %v1089 = vunpack.c.l.b16 %v1044
          %v1090 = vunpack.c.h.b16 %v1044
          %v1091 = vunpack.c.l.b16 %v1045
          %v1092 = vunpack.c.h.b16 %v1045
          %v1093 = vunpack.c.l.b16 %v1046
          %v1094 = vunpack.c.h.b16 %v1046
          %v1095 = vpack.c.b16 %v1063, %v1063
          %v1096 = vpack.c.b16 %v1064, %v1064
          %v1097 = vpack.c.b16 %v1065, %v1065
          %v1098 = vpack.c.b16 %v1066, %v1066
          %v1099 = vpack.c.b16 %v1067, %v1067
          %v1100 = vpack.c.b16 %v1068, %v1068
          %v1101 = vpack.c.b16 %v1069, %v1069
          %v1102 = vpack.c.b16 %v1070, %v1070
          %v1103 = vpack.c.b16 %v1071, %v1071
          %v1104 = vpack.c.b16 %v1072, %v1072
          %v1105 = vpack.c.b16 %v1073, %v1073
          %v1106 = vpack.c.b16 %v1074, %v1074
          %v1107 = vpack.c.b16 %v1075, %v1075
          %v1108 = vpack.c.b16 %v1076, %v1076
          %v1109 = vpack.c.b16 %v1077, %v1077
          %v1110 = vpack.c.b16 %v1078, %v1078
          %v1111 = vpack.c.b16 %v1079, %v1079
          %v1112 = vpack.c.b16 %v1080, %v1080
          %v1113 = vpack.c.b16 %v1081, %v1081
          %v1114 = vpack.c.b16 %v1082, %v1082
          %v1115 = vpack.c.b16 %v1083, %v1083
          %v1116 = vpack.c.b16 %v1084, %v1084
          %v1117 = vpack.c.b16 %v1085, %v1085
          %v1118 = vpack.c.b16 %v1086, %v1086
          %v1119 = vpack.c.b16 %v1087, %v1087
          %v1120 = vpack.c.b16 %v1088, %v1088
          %v1121 = vpack.c.b16 %v1089, %v1089
          %v1122 = vpack.c.b16 %v1090, %v1090
          %v1123 = vpack.c.b16 %v1091, %v1091
          %v1124 = vpack.c.b16 %v1092, %v1092
          %v1125 = vpack.c.b16 %v1093, %v1093
          %v1126 = vpack.c.b16 %v1094, %v1094
          %1159 = vst [vmem:[%s271] sm:$0xf] %v1095
          %1160 = vst [vmem:[%s271 + $0x4] sm:$0xf] %v1096
          %1161 = vst [vmem:[%s271 + $0x8] sm:$0xf] %v1097
          %1162 = vst [vmem:[%s271 + $0xc] sm:$0xf] %v1098
          %1163 = vst [vmem:[%s271 + $0x10] sm:$0xf] %v1099
          %1164 = vst [vmem:[%s271 + $0x14] sm:$0xf] %v1100
          %1165 = vst [vmem:[%s271 + $0x18] sm:$0xf] %v1101
          %1166 = vst [vmem:[%s271 + $0x1c] sm:$0xf] %v1102
          %1167 = vst [vmem:[%s271 + $0x20] sm:$0xf] %v1103
          %1168 = vst [vmem:[%s271 + $0x24] sm:$0xf] %v1104
          %1169 = vst [vmem:[%s271 + $0x28] sm:$0xf] %v1105
          %1170 = vst [vmem:[%s271 + $0x2c] sm:$0xf] %v1106
          %1171 = vst [vmem:[%s271 + $0x30] sm:$0xf] %v1107
          %1172 = vst [vmem:[%s271 + $0x34] sm:$0xf] %v1108
          %1173 = vst [vmem:[%s271 + $0x38] sm:$0xf] %v1109
          %1174 = vst [vmem:[%s271 + $0x3c] sm:$0xf] %v1110
          %1175 = vst [vmem:[%s271 + $0x40] sm:$0xf] %v1111
          %1176 = vst [vmem:[%s271 + $0x44] sm:$0xf] %v1112
          %1177 = vst [vmem:[%s271 + $0x48] sm:$0xf] %v1113
          %1178 = vst [vmem:[%s271 + $0x4c] sm:$0xf] %v1114
          %1179 = vst [vmem:[%s271 + $0x50] sm:$0xf] %v1115
          %1180 = vst [vmem:[%s271 + $0x54] sm:$0xf] %v1116
          %1181 = vst [vmem:[%s271 + $0x58] sm:$0xf] %v1117
          %1182 = vst [vmem:[%s271 + $0x5c] sm:$0xf] %v1118
          %1183 = vst [vmem:[%s271 + $0x60] sm:$0xf] %v1119
          %1184 = vst [vmem:[%s271 + $0x64] sm:$0xf] %v1120
          %1185 = vst [vmem:[%s271 + $0x68] sm:$0xf] %v1121
          %1186 = vst [vmem:[%s271 + $0x6c] sm:$0xf] %v1122
          %1187 = vst [vmem:[%s271 + $0x70] sm:$0xf] %v1123
          %1188 = vst [vmem:[%s271 + $0x74] sm:$0xf] %v1124
          %1189 = vst [vmem:[%s271 + $0x78] sm:$0xf] %v1125
          %1190 = vst [vmem:[%s271 + $0x7c] sm:$0xf] %v1126
        $region48: #{_conv_bn_apply.1} parent=35 // pred_fallthru
          _
        %s1191 = sand.u32 %s155, 1
        %s1192 = scalar_lea.sflag [#allocation4], %s1191
        %s1193 = sand.u32 %s155, 1
        %s1194 = smul.addr %s1193, 128
        %s1195 = scalar_lea.vmem [#allocation3], %s1194
        // Predicated region
        $region49: #{_conv_bn_apply.1} parent=35 // pred_check
          %p1196 = pneg %p165
        $region50: #{_conv_bn_apply.1} parent=35 // pred_check_branch
          %1198 = sbr.rel (%p1196) target = $region52
        $region51: #{_conv_bn_apply.1} parent=35 // pred_region
          %s1199 = smul.u32 32, %s23
          %s1201 = ssub.s32 2048, 2048
          %1202 = vsyncadd %s1192, %s1201
          %s1203 = sadd.s32 %s24, %s1199
          %s1204 = smul.addr %s1203, 64
          %s1205 = scalar_lea.hbm %s4, %s1204
          %s1206 = sshll.u32 %s1195, 4
          %s1207 = int_to_ptr.vmem [resolvable:$true] %s1206
          %1212 = dma.vmem_to_hbm [thread:$0]  %s1207, 2048, %s1205, %s1192, 64, 64, 4
        $region52: #{_conv_bn_apply.1} parent=35 // pred_fallthru
          _
      $region36: #{_conv_bn_apply.1} parent=5 // pred_fallthru
        _
      %p1213 = scmp.le.s32.totalorder 2, %s13
      // Predicated region
      $region53: #{_conv_bn_apply.1} parent=5 // pred_check
        %p1214 = pneg %p1213
      $region54: #{_conv_bn_apply.1} parent=5 // pred_check_branch
        %1216 = sbr.rel (%p1214) target = $region56
      $region55: #{_conv_bn_apply.1} parent=5 // pred_region
        %s1217 = ssub.s32 %s13, 2
        // Predicated region
        $region57: #{_conv_bn_apply.1} parent=55 // pred_check
          %p1218 = pneg %p171
        $region58: #{_conv_bn_apply.1} parent=55 // pred_check_branch
          %1220 = sbr.rel (%p1218) target = $region60
        $region59: #{_conv_bn_apply.1} parent=55 // pred_region
          %s1221 = sand.u32 %s156, 1
          %s1222 = scalar_lea.sflag [#allocation4], %s1221
          %s1223 = sand.u32 %s156, 1
          %s1224 = smul.addr %s1223, 128
          %s1225 = scalar_lea.vmem [#allocation3], %s1224
          %1226 = dma.done %s1222, 2048
        $region60: #{_conv_bn_apply.1} parent=55 // pred_fallthru
          _
      $region56: #{_conv_bn_apply.1} parent=5 // pred_fallthru
        _
    $region6: #{_conv_bn_apply.1} parent=1 // loop_footer
      %s17 = sadd.s32 1, %s13
    $region7: #{_conv_bn_apply.1} parent=1 // loop_footer_branch
      %12 = sbr.rel target = $region3
    $region8: #{_conv_bn_apply.1} parent=1 // loop_exit
      _
    %1227 = vsyncpa [#allocation4], 1
    %s1228 = scalar_lea.sflag [#allocation4], 1
    %1229 = vsyncpa %s1228, 1

</llo_original>
